<compile_context>
chip_gen: v7x
topology: tpu7x:2x2x1
jax: 0.10.0
libtpu: 0.0.40
codegen_flags: <defaults>
</compile_context>

<pallas_src>
import math

import jax
import jax.numpy as jnp
from jax.experimental import pallas as pl
from jax.experimental.pallas import tpu as pltpu


# ----------------------------- kernel ---------------------------------------


def dqn_mlp_kernel(x_ref,
                   w1_ref, b1_ref,
                   w2_ref, b2_ref,
                   w3_ref, b3_ref,
                   w4_ref, b4_ref,
                   o_ref):
    # Feature-major layout: activations are (features, TILE_B) with the batch
    # on the lane axis; weights are stored transposed as (out_features, in).
    x = x_ref[...]                                     # (in_pad, TILE_B) f32

    # Layer 1: Linear(input_dim, 64 -> padded 128) + ReLU
    if w1_ref.shape[1] == 1:
        # K == 1: broadcast outer-product on the VPU (skip the MXU).
        h = w1_ref[...].astype(jnp.float32) * x + b1_ref[...]
    else:
        h = (jnp.dot(w1_ref[...], x.astype(w1_ref.dtype),
                     preferred_element_type=jnp.float32) + b1_ref[...])
    h = jnp.maximum(h, 0.0)

    # Layer 2: Linear(64, 64), padded to 128x128, + ReLU
    h = (jnp.dot(w2_ref[...], h.astype(w2_ref.dtype),
                 preferred_element_type=jnp.float32) + b2_ref[...])
    h = jnp.maximum(h, 0.0)

    # Layer 3: Linear(64, 128), padded to 128x128, + ReLU
    h = (jnp.dot(w3_ref[...], h.astype(w3_ref.dtype),
                 preferred_element_type=jnp.float32) + b3_ref[...])
    h = jnp.maximum(h, 0.0)

    # Layer 4: Linear(128, n_actions -> padded 8 rows), no activation.
    # Output block is (8, TILE_B): lane-dense along the batch.
    o_ref[...] = (jnp.dot(w4_ref[...], h.astype(w4_ref.dtype),
                          preferred_element_type=jnp.float32)
                  + b4_ref[...]).astype(o_ref.dtype)


# ----------------------------- helpers ---------------------------------------


def _round_up(x, m):
    return (x + m - 1) // m * m


def _cdiv(a, b):
    return -(-a // b)


def init_params(key, input_dim, n_actions):
    """Raw (unpadded) params mimicking PyTorch's default Linear init.
    Weights stored as (in_features, out_features) so y = x @ W + b."""
    dims = [(input_dim, 64), (64, 64), (64, 128), (128, n_actions)]
    params = []
    for fan_in, fan_out in dims:
        key, kw, kb = jax.random.split(key, 3)
        bound = 1.0 / (fan_in ** 0.5)
        w = jax.random.uniform(kw, (fan_in, fan_out), jnp.float32, -bound, bound)
        b = jax.random.uniform(kb, (1, fan_out), jnp.float32, -bound, bound)
        params.append((w, b))
    return params


def pad_params(params, param_dtype=jnp.bfloat16):
    """Store every weight transposed as (out_padded, in_padded) and every bias
    as a column vector (out_padded, 1). Hidden widths pad to 128 (lanes of the
    activations), output rows pad to a multiple of 8 (sublanes). Padding is
    exactly zero, so real Q-values are unchanged. Weights cast to
    `param_dtype` (bf16 default); biases stay f32."""
    (w1, b1), (w2, b2), (w3, b3), (w4, b4) = params
    in_dim = w1.shape[0]
    in_pad = in_dim if in_dim == 1 else _round_up(in_dim, 8)
    h1 = _round_up(w1.shape[1], 128)                  # 64  -> 128
    h2 = _round_up(w2.shape[1], 128)                  # 64  -> 128
    h3 = _round_up(w3.shape[1], 128)                  # 128 -> 128
    out_rows = _round_up(w4.shape[1], 8)              # n_actions -> 8

    def pad_wt(w, rows, cols, dtype):
        out = jnp.zeros((rows, cols), jnp.float32)
        out = out.at[: w.shape[1], : w.shape[0]].set(w.T)
        return out.astype(dtype)

    def pad_bt(b, rows):
        out = jnp.zeros((rows, 1), jnp.float32)
        return out.at[: b.shape[1], 0].set(b[0])

    return (
        (pad_wt(w1, h1, in_pad, param_dtype), pad_bt(b1, h1)),
        (pad_wt(w2, h2, h1, param_dtype), pad_bt(b2, h2)),
        (pad_wt(w3, h3, h2, param_dtype), pad_bt(b3, h3)),
        (pad_wt(w4, out_rows, h3, param_dtype), pad_bt(b4, out_rows)),
    )


def _select_tile(B, tile_b_max):
    """Batch tile (multiple of 128) and padded batch. Prefers an even number
    of grid steps (>=2) so v7x's two TensorCores both get work; tiny batches
    collapse to a single 128-wide tile."""
    b128 = _round_up(max(B, 1), 128)
    if b128 <= 128:
        return 128, 128
    n_tiles = max(2, 2 * _cdiv(b128, 2 * tile_b_max))
    tb = _round_up(_cdiv(b128, n_tiles), 128)
    b_pad = _round_up(b128, tb)
    return tb, b_pad


# ----------------------------- wrapper ---------------------------------------


def dqn_vector_forward(obs, padded_params, n_actions, *, tile_b=2048):
    """obs: (B, input_dim) float32 -> Q-values (B, n_actions) float32."""
    (w1, b1), (w2, b2), (w3, b3), (w4, b4) = padded_params
    B, input_dim = obs.shape
    in_pad = w1.shape[1]
    h1, h2, h3 = w1.shape[0], w2.shape[0], w3.shape[0]
    out_rows = w4.shape[0]

    tb, b_pad = _select_tile(B, tile_b)
    grid = (b_pad // tb,)

    # Feature-major input: (in_pad, b_pad), batch on the lane axis.
    obs_t = jnp.zeros((in_pad, b_pad), jnp.float32)
    obs_t = obs_t.at[:input_dim, :B].set(obs.T)

    def const_spec(shape):
        # Block index never changes -> operand stays resident in VMEM.
        return pl.BlockSpec(shape, lambda i: (0, 0))

    flops_per_col = 2 * (in_pad * h1 + h1 * h2 + h2 * h3 + h3 * out_rows)
    param_bytes = sum(int(w.size) * w.dtype.itemsize + int(b.size) * 4
                      for (w, b) in padded_params)
    cost = pl.CostEstimate(
        flops=int(flops_per_col * b_pad),
        transcendentals=0,
        bytes_accessed=int(obs_t.size * 4 + out_rows * b_pad * 4 + param_bytes),
    )

    out = pl.pallas_call(
        dqn_mlp_kernel,
        out_shape=jax.ShapeDtypeStruct((out_rows, b_pad), jnp.float32),
        grid_spec=pltpu.PrefetchScalarGridSpec(
            num_scalar_prefetch=0,
            grid=grid,
            in_specs=[
                pl.BlockSpec((in_pad, tb), lambda i: (0, i)),
                const_spec(w1.shape), const_spec(b1.shape),
                const_spec(w2.shape), const_spec(b2.shape),
                const_spec(w3.shape), const_spec(b3.shape),
                const_spec(w4.shape), const_spec(b4.shape),
            ],
            out_specs=pl.BlockSpec((out_rows, tb), lambda i: (0, i)),
        ),
        compiler_params=pltpu.CompilerParams(
            dimension_semantics=("parallel",),
            vmem_limit_bytes=32 * 1024 * 1024),
        cost_estimate=cost,
    )(obs_t, w1, b1, w2, b2, w3, b3, w4, b4)

    # Drop padded rows/cols and return (B, n_actions). Tiny transpose in XLA.
    return out[:n_actions, :B].T


def reference_forward(obs, raw_params, param_dtype=jnp.bfloat16):
    """Pure-JAX reference mirroring the kernel's dtype handling (unpadded,
    row-major). Weights cast to bf16 like the kernel."""
    (w1, b1), (w2, b2), (w3, b3), (w4, b4) = raw_params
    if w1.shape[0] == 1:
        h = obs * w1.astype(param_dtype).astype(jnp.float32) + b1
    else:
        h = jnp.dot(obs.astype(param_dtype), w1.astype(param_dtype),
                    preferred_element_type=jnp.float32) + b1
    h = jnp.maximum(h, 0.0)
    h = jnp.dot(h.astype(param_dtype), w2.astype(param_dtype),
                preferred_element_type=jnp.float32) + b2
    h = jnp.maximum(h, 0.0)
    h = jnp.dot(h.astype(param_dtype), w3.astype(param_dtype),
                preferred_element_type=jnp.float32) + b3
    h = jnp.maximum(h, 0.0)
    return jnp.dot(h.astype(param_dtype), w4.astype(param_dtype),
                   preferred_element_type=jnp.float32) + b4


# ------------------------------- main ----------------------------------------


if __name__ == "__main__":
    input_dim = 1               # as in the reference script
    action_shape = (4,)
    n_actions = int(math.prod(action_shape))

    key = jax.random.PRNGKey(0)
    key_obs, key_params = jax.random.split(key)

    raw_params = init_params(key_params, input_dim, n_actions)
    padded_params = pad_params(raw_params, param_dtype=jnp.bfloat16)

    # B=200 -> padded to 256 columns, tb=128, grid=(2,) (both v7x cores used).
    B = 200
    obs = jax.random.normal(key_obs, (B, input_dim), dtype=jnp.float32)

    q = dqn_vector_forward(obs, padded_params, n_actions)
    q = jax.block_until_ready(q)
    assert q.shape == (B, n_actions), q.shape
    assert q.dtype == jnp.float32

    q_ref = reference_forward(obs, raw_params)
    assert bool(jnp.allclose(q, q_ref, atol=1e-2, rtol=1e-2)), (
        float(jnp.max(jnp.abs(q - q_ref))))

    # Tiny-batch path (B < 128): exercises batch padding + single-tile grid.
    obs_small = obs[:4]
    q_small = jax.block_until_ready(
        dqn_vector_forward(obs_small, padded_params, n_actions))
    assert q_small.shape == (4, n_actions)
    assert bool(jnp.allclose(q_small, q_ref[:4], atol=1e-2, rtol=1e-2))

    print("KERNEL_OK")
</pallas_src>

<mosaic_0001>
module attributes {stable_mosaic.version = 11 : i64} {
  func.func @dqn_mlp_kernel(%arg0: i32, %arg1: memref<1x128xf32, #tpu.memory_space<vmem>>, %arg2: memref<128x1xbf16, #tpu.memory_space<vmem>>, %arg3: memref<128x1xf32, #tpu.memory_space<vmem>>, %arg4: memref<128x128xbf16, #tpu.memory_space<vmem>>, %arg5: memref<128x1xf32, #tpu.memory_space<vmem>>, %arg6: memref<128x128xbf16, #tpu.memory_space<vmem>>, %arg7: memref<128x1xf32, #tpu.memory_space<vmem>>, %arg8: memref<8x128xbf16, #tpu.memory_space<vmem>>, %arg9: memref<8x1xf32, #tpu.memory_space<vmem>>, %arg10: memref<8x128xf32, #tpu.memory_space<vmem>>) attributes {dimension_semantics = [#tpu.dimension_semantics<parallel>], iteration_bounds = array<i64: 2>, scalar_prefetch = 0 : i64, scratch_operands = 0 : i64, tpu.core_type = #tpu.core_type<tc>, window_params = [{transform_indices = @transform_0, window_bounds = array<i64: 1, 128>}, {pipeline_mode = #tpu.pipeline_mode<synchronous>, transform_indices = @transform_1, window_bounds = array<i64: 128, 1>}, {pipeline_mode = #tpu.pipeline_mode<synchronous>, transform_indices = @transform_2, window_bounds = array<i64: 128, 1>}, {pipeline_mode = #tpu.pipeline_mode<synchronous>, transform_indices = @transform_3, window_bounds = array<i64: 128, 128>}, {pipeline_mode = #tpu.pipeline_mode<synchronous>, transform_indices = @transform_4, window_bounds = array<i64: 128, 1>}, {pipeline_mode = #tpu.pipeline_mode<synchronous>, transform_indices = @transform_5, window_bounds = array<i64: 128, 128>}, {pipeline_mode = #tpu.pipeline_mode<synchronous>, transform_indices = @transform_6, window_bounds = array<i64: 128, 1>}, {pipeline_mode = #tpu.pipeline_mode<synchronous>, transform_indices = @transform_7, window_bounds = array<i64: 8, 128>}, {pipeline_mode = #tpu.pipeline_mode<synchronous>, transform_indices = @transform_8, window_bounds = array<i64: 8, 1>}, {transform_indices = @transform_9, window_bounds = array<i64: 8, 128>}]} {
    %c0 = arith.constant 0 : index
    %c0_0 = arith.constant 0 : index
    %0 = vector.load %arg1[%c0, %c0_0] : memref<1x128xf32, #tpu.memory_space<vmem>>, vector<1x128xf32>
    %c0_1 = arith.constant 0 : index
    %c0_2 = arith.constant 0 : index
    %1 = vector.load %arg2[%c0_1, %c0_2] : memref<128x1xbf16, #tpu.memory_space<vmem>>, vector<128x1xbf16>
    %2 = arith.extf %1 : vector<128x1xbf16> to vector<128x1xf32>
    %3 = vector.broadcast %2 : vector<128x1xf32> to vector<128x128xf32>
    %4 = vector.broadcast %0 : vector<1x128xf32> to vector<128x128xf32>
    %5 = arith.mulf %3, %4 : vector<128x128xf32>
    %c0_3 = arith.constant 0 : index
    %c0_4 = arith.constant 0 : index
    %6 = vector.load %arg3[%c0_3, %c0_4] : memref<128x1xf32, #tpu.memory_space<vmem>>, vector<128x1xf32>
    %7 = vector.broadcast %6 : vector<128x1xf32> to vector<128x128xf32>
    %8 = arith.addf %5, %7 : vector<128x128xf32>
    %cst = arith.constant 0.000000e+00 : f32
    %9 = vector.broadcast %cst : f32 to vector<128x128xf32>
    %10 = arith.maximumf %8, %9 : vector<128x128xf32>
    %c0_5 = arith.constant 0 : index
    %c0_6 = arith.constant 0 : index
    %11 = vector.load %arg4[%c0_5, %c0_6] : memref<128x128xbf16, #tpu.memory_space<vmem>>, vector<128x128xbf16>
    %12 = arith.truncf %10 : vector<128x128xf32> to vector<128x128xbf16>
    %cst_7 = arith.constant dense<0.000000e+00> : vector<128x128xf32>
    %13 = tpu.matmul %11, %12, %cst_7 {dimension_numbers = #tpu.dot_dimension_numbers<[1], [0], [0], [1], [0, 0, 1, 1], [], []>} : vector<128x128xbf16>, vector<128x128xbf16>, vector<128x128xf32> -> vector<128x128xf32>
    %c0_8 = arith.constant 0 : index
    %c0_9 = arith.constant 0 : index
    %14 = vector.load %arg5[%c0_8, %c0_9] : memref<128x1xf32, #tpu.memory_space<vmem>>, vector<128x1xf32>
    %15 = vector.broadcast %14 : vector<128x1xf32> to vector<128x128xf32>
    %16 = arith.addf %13, %15 : vector<128x128xf32>
    %cst_10 = arith.constant 0.000000e+00 : f32
    %17 = vector.broadcast %cst_10 : f32 to vector<128x128xf32>
    %18 = arith.maximumf %16, %17 : vector<128x128xf32>
    %c0_11 = arith.constant 0 : index
    %c0_12 = arith.constant 0 : index
    %19 = vector.load %arg6[%c0_11, %c0_12] : memref<128x128xbf16, #tpu.memory_space<vmem>>, vector<128x128xbf16>
    %20 = arith.truncf %18 : vector<128x128xf32> to vector<128x128xbf16>
    %cst_13 = arith.constant dense<0.000000e+00> : vector<128x128xf32>
    %21 = tpu.matmul %19, %20, %cst_13 {dimension_numbers = #tpu.dot_dimension_numbers<[1], [0], [0], [1], [0, 0, 1, 1], [], []>} : vector<128x128xbf16>, vector<128x128xbf16>, vector<128x128xf32> -> vector<128x128xf32>
    %c0_14 = arith.constant 0 : index
    %c0_15 = arith.constant 0 : index
    %22 = vector.load %arg7[%c0_14, %c0_15] : memref<128x1xf32, #tpu.memory_space<vmem>>, vector<128x1xf32>
    %23 = vector.broadcast %22 : vector<128x1xf32> to vector<128x128xf32>
    %24 = arith.addf %21, %23 : vector<128x128xf32>
    %cst_16 = arith.constant 0.000000e+00 : f32
    %25 = vector.broadcast %cst_16 : f32 to vector<128x128xf32>
    %26 = arith.maximumf %24, %25 : vector<128x128xf32>
    %c0_17 = arith.constant 0 : index
    %c0_18 = arith.constant 0 : index
    %27 = vector.load %arg8[%c0_17, %c0_18] : memref<8x128xbf16, #tpu.memory_space<vmem>>, vector<8x128xbf16>
    %28 = arith.truncf %26 : vector<128x128xf32> to vector<128x128xbf16>
    %cst_19 = arith.constant dense<0.000000e+00> : vector<8x128xf32>
    %29 = tpu.matmul %27, %28, %cst_19 {dimension_numbers = #tpu.dot_dimension_numbers<[1], [0], [0], [1], [0, 0, 1, 1], [], []>} : vector<8x128xbf16>, vector<128x128xbf16>, vector<8x128xf32> -> vector<8x128xf32>
    %c0_20 = arith.constant 0 : index
    %c0_21 = arith.constant 0 : index
    %30 = vector.load %arg9[%c0_20, %c0_21] : memref<8x1xf32, #tpu.memory_space<vmem>>, vector<8x1xf32>
    %31 = vector.broadcast %30 : vector<8x1xf32> to vector<8x128xf32>
    %32 = arith.addf %29, %31 : vector<8x128xf32>
    %c0_22 = arith.constant 0 : index
    %c0_23 = arith.constant 0 : index
    %33 = vector.load %arg10[%c0_22, %c0_23] : memref<8x128xf32, #tpu.memory_space<vmem>>, vector<8x128xf32>
    tpu.vector_store %arg10[%c0_22, %c0_23], %32 {strides = array<i32>} : memref<8x128xf32, #tpu.memory_space<vmem>>, vector<8x128xf32>,
    return
  }
  func.func @transform_0(%arg0: i32) -> (i32, i32) {
    %c0_i32 = arith.constant 0 : i32
    %c0_i32_0 = arith.constant 0 : i32
    return %c0_i32, %arg0 : i32, i32
  }
  func.func @transform_1(%arg0: i32) -> (i32, i32) {
    %c0_i32 = arith.constant 0 : i32
    %c0_i32_0 = arith.constant 0 : i32
    %c0_i32_1 = arith.constant 0 : i32
    return %c0_i32, %c0_i32_0 : i32, i32
  }
  func.func @transform_2(%arg0: i32) -> (i32, i32) {
    %c0_i32 = arith.constant 0 : i32
    %c0_i32_0 = arith.constant 0 : i32
    %c0_i32_1 = arith.constant 0 : i32
    return %c0_i32, %c0_i32_0 : i32, i32
  }
  func.func @transform_3(%arg0: i32) -> (i32, i32) {
    %c0_i32 = arith.constant 0 : i32
    %c0_i32_0 = arith.constant 0 : i32
    %c0_i32_1 = arith.constant 0 : i32
    return %c0_i32, %c0_i32_0 : i32, i32
  }
  func.func @transform_4(%arg0: i32) -> (i32, i32) {
    %c0_i32 = arith.constant 0 : i32
    %c0_i32_0 = arith.constant 0 : i32
    %c0_i32_1 = arith.constant 0 : i32
    return %c0_i32, %c0_i32_0 : i32, i32
  }
  func.func @transform_5(%arg0: i32) -> (i32, i32) {
    %c0_i32 = arith.constant 0 : i32
    %c0_i32_0 = arith.constant 0 : i32
    %c0_i32_1 = arith.constant 0 : i32
    return %c0_i32, %c0_i32_0 : i32, i32
  }
  func.func @transform_6(%arg0: i32) -> (i32, i32) {
    %c0_i32 = arith.constant 0 : i32
    %c0_i32_0 = arith.constant 0 : i32
    %c0_i32_1 = arith.constant 0 : i32
    return %c0_i32, %c0_i32_0 : i32, i32
  }
  func.func @transform_7(%arg0: i32) -> (i32, i32) {
    %c0_i32 = arith.constant 0 : i32
    %c0_i32_0 = arith.constant 0 : i32
    %c0_i32_1 = arith.constant 0 : i32
    return %c0_i32, %c0_i32_0 : i32, i32
  }
  func.func @transform_8(%arg0: i32) -> (i32, i32) {
    %c0_i32 = arith.constant 0 : i32
    %c0_i32_0 = arith.constant 0 : i32
    %c0_i32_1 = arith.constant 0 : i32
    return %c0_i32, %c0_i32_0 : i32, i32
  }
  func.func @transform_9(%arg0: i32) -> (i32, i32) {
    %c0_i32 = arith.constant 0 : i32
    %c0_i32_0 = arith.constant 0 : i32
    return %c0_i32, %arg0 : i32, i32
  }
}

</mosaic_0001>

<llo_original>
// kernel: tpu_custom_call.1
$region0: #{tpu_custom_call.1}
  #allocation0 [shape = 'u32[]', space=smem, size = 0x4, offset = 0x4, fixed_abs, tag = 'smem constant byte address 0x4 - core index']
  #allocation1 [shape = 'u32[144,128]{1,0:T(1,128)}', space=vmem, size = 0x12000, scoped, tag = 'internal scratch']
  %s0 = inlined_call_operand.vmem [shape: f32[1,256], index: 0, kind: input, shape index: {}]
  %s1 = inlined_call_operand.vmem [shape: bf16[128,1], index: 1, kind: input, shape index: {}]
  %s2 = inlined_call_operand.vmem [shape: f32[128,1], index: 2, kind: input, shape index: {}]
  %s3 = inlined_call_operand.vmem [shape: bf16[128,128], index: 3, kind: input, shape index: {}]
  %s4 = inlined_call_operand.vmem [shape: f32[128,1], index: 4, kind: input, shape index: {}]
  %s5 = inlined_call_operand.vmem [shape: bf16[128,128], index: 5, kind: input, shape index: {}]
  %s6 = inlined_call_operand.vmem [shape: f32[128,1], index: 6, kind: input, shape index: {}]
  %s7 = inlined_call_operand.vmem [shape: bf16[8,128], index: 7, kind: input, shape index: {}]
  %s8 = inlined_call_operand.vmem [shape: f32[8,1], index: 8, kind: input, shape index: {}]
  %s9 = inlined_call_operand.hbm [shape: f32[8,256], index: 9, kind: output, shape index: {}]
  %s10 = sld [smem:[#allocation0]]
  $region69: #{tpu_custom_call.1} parent=0
    _
  %s12 = ssub.s32 1, %s10
  %s13 = scalar_select 0, %s12, %s10
  $region1: #{tpu_custom_call.1} parent=0
    #allocation2 [shape = 'u8[8192]{0}', space=vmem, size = 0x2000, scoped, tag = 'output window, operand 0']
    #allocation3 [shape = 's32[2]{0}', space=sflag, size = 0x8, scoped, tag = 'scoped memory for tpu_custom_call.1']
    %14 = vsyncpa [#allocation3], 0
    %s15 = scalar_lea.sflag [#allocation3], 1
    %16 = vsyncpa %s15, 0
    loop: start=0, step=1, limit=4
    $region2: #{tpu_custom_call.1} parent=1 // loop_pre_header
      _
    $region3: #{tpu_custom_call.1} parent=1 // loop_header
      %s18 = sphi 0, %s22
      %p19 = scmp.ge.s32.totalorder %s18, 4
      %s28 = sphi 0, %s30
      %s31 = sphi 0, %s28
      %s32 = sphi 0, %s31
      %s48 = sphi 0, %s32
      %s52 = sphi 0, %s52
      %s54 = sphi 0, %s52
      %s55 = sphi 0, %s54
      %s69 = sphi 0, %s55
      %s73 = sphi 0, %s73
      %s75 = sphi 0, %s73
      %s76 = sphi 0, %s75
      %s90 = sphi 0, %s76
      %s94 = sphi 0, %s94
      %s96 = sphi 0, %s94
      %s97 = sphi 0, %s96
      %s111 = sphi 0, %s97
      %s115 = sphi 0, %s115
      %s117 = sphi 0, %s115
      %s118 = sphi 0, %s117
      %s132 = sphi 0, %s118
      %s136 = sphi 0, %s136
      %s138 = sphi 0, %s136
      %s139 = sphi 0, %s138
      %s153 = sphi 0, %s139
      %s157 = sphi 0, %s157
      %s159 = sphi 0, %s157
      %s160 = sphi 0, %s159
      %s174 = sphi 0, %s160
      %s178 = sphi 0, %s178
      %s180 = sphi 0, %s178
      %s181 = sphi 0, %s180
      %s195 = sphi 0, %s181
      %s199 = sphi 0, %s199
      %s201 = sphi 0, %s199
      %s202 = sphi 0, %s201
      %s216 = sphi 0, %s202
      %s222 = sphi 0, %s224
      %s225 = sphi 0, %s222
      %s226 = sphi 0, %s225
      %s242 = sphi 0, %s226
    $region4: #{tpu_custom_call.1} parent=1 // loop_header_branch
      %21 = sbr.rel (%p19) target = $region8
    $region5: #{tpu_custom_call.1} parent=1 // loop_body
      %s23 = ssub.s32 %s18, 1
      %s24 = ssub.s32 %s18, 2
      %s25 = sadd.s32 %s18, 1
      %s26 = ssub.s32 %s18, %s25
      %p27 = scmp.eq.s32.totalorder %s26, 0
      %s29 = sadd.s32 %s28, 1
      %s30 = scalar_select %p27, %s28, %s29
      %p33 = pneg %p27
      %p34 = scmp.eq.s32.totalorder %s18, 1
      %p35 = por %p33, %p34
      %p36 = scmp.ne.s32.totalorder %s28, %s31
      %p37 = scmp.eq.s32.totalorder %s18, 0
      %p38 = por %p36, %p37
      %p39 = scmp.ne.s32.totalorder %s28, %s31
      %p40 = scmp.eq.s32.totalorder %s23, 1
      %p41 = por %p39, %p40
      %p42 = scmp.ne.s32.totalorder %s31, %s32
      %p43 = scmp.eq.s32.totalorder %s23, 0
      %p44 = por %p42, %p43
      %p45 = scmp.ne.s32.totalorder %s31, %s32
      %p46 = scmp.eq.s32.totalorder %s24, 1
      %p47 = por %p45, %p46
      %p49 = scmp.ne.s32.totalorder %s32, %s48
      %p50 = scmp.eq.s32.totalorder %s24, 0
      %p51 = por %p49, %p50
      %s53 = sadd.s32 %s52, 1
      %p56 = scmp.eq.s32.totalorder %s18, 1
      %p57 = scmp.ne.s32.totalorder %s52, %s54
      %p58 = scmp.eq.s32.totalorder %s18, 0
      %p59 = por %p57, %p58
      %p60 = scmp.ne.s32.totalorder %s52, %s54
      %p61 = scmp.eq.s32.totalorder %s23, 1
      %p62 = por %p60, %p61
      %p63 = scmp.ne.s32.totalorder %s54, %s55
      %p64 = scmp.eq.s32.totalorder %s23, 0
      %p65 = por %p63, %p64
      %p66 = scmp.ne.s32.totalorder %s54, %s55
      %p67 = scmp.eq.s32.totalorder %s24, 1
      %p68 = por %p66, %p67
      %p70 = scmp.ne.s32.totalorder %s55, %s69
      %p71 = scmp.eq.s32.totalorder %s24, 0
      %p72 = por %p70, %p71
      %s74 = sadd.s32 %s73, 1
      %p77 = scmp.eq.s32.totalorder %s18, 1
      %p78 = scmp.ne.s32.totalorder %s73, %s75
      %p79 = scmp.eq.s32.totalorder %s18, 0
      %p80 = por %p78, %p79
      %p81 = scmp.ne.s32.totalorder %s73, %s75
      %p82 = scmp.eq.s32.totalorder %s23, 1
      %p83 = por %p81, %p82
      %p84 = scmp.ne.s32.totalorder %s75, %s76
      %p85 = scmp.eq.s32.totalorder %s23, 0
      %p86 = por %p84, %p85
      %p87 = scmp.ne.s32.totalorder %s75, %s76
      %p88 = scmp.eq.s32.totalorder %s24, 1
      %p89 = por %p87, %p88
      %p91 = scmp.ne.s32.totalorder %s76, %s90
      %p92 = scmp.eq.s32.totalorder %s24, 0
      %p93 = por %p91, %p92
      %s95 = sadd.s32 %s94, 1
      %p98 = scmp.eq.s32.totalorder %s18, 1
      %p99 = scmp.ne.s32.totalorder %s94, %s96
      %p100 = scmp.eq.s32.totalorder %s18, 0
      %p101 = por %p99, %p100
      %p102 = scmp.ne.s32.totalorder %s94, %s96
      %p103 = scmp.eq.s32.totalorder %s23, 1
      %p104 = por %p102, %p103
      %p105 = scmp.ne.s32.totalorder %s96, %s97
      %p106 = scmp.eq.s32.totalorder %s23, 0
      %p107 = por %p105, %p106
      %p108 = scmp.ne.s32.totalorder %s96, %s97
      %p109 = scmp.eq.s32.totalorder %s24, 1
      %p110 = por %p108, %p109
      %p112 = scmp.ne.s32.totalorder %s97, %s111
      %p113 = scmp.eq.s32.totalorder %s24, 0
      %p114 = por %p112, %p113
      %s116 = sadd.s32 %s115, 1
      %p119 = scmp.eq.s32.totalorder %s18, 1
      %p120 = scmp.ne.s32.totalorder %s115, %s117
      %p121 = scmp.eq.s32.totalorder %s18, 0
      %p122 = por %p120, %p121
      %p123 = scmp.ne.s32.totalorder %s115, %s117
      %p124 = scmp.eq.s32.totalorder %s23, 1
      %p125 = por %p123, %p124
      %p126 = scmp.ne.s32.totalorder %s117, %s118
      %p127 = scmp.eq.s32.totalorder %s23, 0
      %p128 = por %p126, %p127
      %p129 = scmp.ne.s32.totalorder %s117, %s118
      %p130 = scmp.eq.s32.totalorder %s24, 1
      %p131 = por %p129, %p130
      %p133 = scmp.ne.s32.totalorder %s118, %s132
      %p134 = scmp.eq.s32.totalorder %s24, 0
      %p135 = por %p133, %p134
      %s137 = sadd.s32 %s136, 1
      %p140 = scmp.eq.s32.totalorder %s18, 1
      %p141 = scmp.ne.s32.totalorder %s136, %s138
      %p142 = scmp.eq.s32.totalorder %s18, 0
      %p143 = por %p141, %p142
      %p144 = scmp.ne.s32.totalorder %s136, %s138
      %p145 = scmp.eq.s32.totalorder %s23, 1
      %p146 = por %p144, %p145
      %p147 = scmp.ne.s32.totalorder %s138, %s139
      %p148 = scmp.eq.s32.totalorder %s23, 0
      %p149 = por %p147, %p148
      %p150 = scmp.ne.s32.totalorder %s138, %s139
      %p151 = scmp.eq.s32.totalorder %s24, 1
      %p152 = por %p150, %p151
      %p154 = scmp.ne.s32.totalorder %s139, %s153
      %p155 = scmp.eq.s32.totalorder %s24, 0
      %p156 = por %p154, %p155
      %s158 = sadd.s32 %s157, 1
      %p161 = scmp.eq.s32.totalorder %s18, 1
      %p162 = scmp.ne.s32.totalorder %s157, %s159
      %p163 = scmp.eq.s32.totalorder %s18, 0
      %p164 = por %p162, %p163
      %p165 = scmp.ne.s32.totalorder %s157, %s159
      %p166 = scmp.eq.s32.totalorder %s23, 1
      %p167 = por %p165, %p166
      %p168 = scmp.ne.s32.totalorder %s159, %s160
      %p169 = scmp.eq.s32.totalorder %s23, 0
      %p170 = por %p168, %p169
      %p171 = scmp.ne.s32.totalorder %s159, %s160
      %p172 = scmp.eq.s32.totalorder %s24, 1
      %p173 = por %p171, %p172
      %p175 = scmp.ne.s32.totalorder %s160, %s174
      %p176 = scmp.eq.s32.totalorder %s24, 0
      %p177 = por %p175, %p176
      %s179 = sadd.s32 %s178, 1
      %p182 = scmp.eq.s32.totalorder %s18, 1
      %p183 = scmp.ne.s32.totalorder %s178, %s180
      %p184 = scmp.eq.s32.totalorder %s18, 0
      %p185 = por %p183, %p184
      %p186 = scmp.ne.s32.totalorder %s178, %s180
      %p187 = scmp.eq.s32.totalorder %s23, 1
      %p188 = por %p186, %p187
      %p189 = scmp.ne.s32.totalorder %s180, %s181
      %p190 = scmp.eq.s32.totalorder %s23, 0
      %p191 = por %p189, %p190
      %p192 = scmp.ne.s32.totalorder %s180, %s181
      %p193 = scmp.eq.s32.totalorder %s24, 1
      %p194 = por %p192, %p193
      %p196 = scmp.ne.s32.totalorder %s181, %s195
      %p197 = scmp.eq.s32.totalorder %s24, 0
      %p198 = por %p196, %p197
      %s200 = sadd.s32 %s199, 1
      %p203 = scmp.eq.s32.totalorder %s18, 1
      %p204 = scmp.ne.s32.totalorder %s199, %s201
      %p205 = scmp.eq.s32.totalorder %s18, 0
      %p206 = por %p204, %p205
      %p207 = scmp.ne.s32.totalorder %s199, %s201
      %p208 = scmp.eq.s32.totalorder %s23, 1
      %p209 = por %p207, %p208
      %p210 = scmp.ne.s32.totalorder %s201, %s202
      %p211 = scmp.eq.s32.totalorder %s23, 0
      %p212 = por %p210, %p211
      %p213 = scmp.ne.s32.totalorder %s201, %s202
      %p214 = scmp.eq.s32.totalorder %s24, 1
      %p215 = por %p213, %p214
      %p217 = scmp.ne.s32.totalorder %s202, %s216
      %p218 = scmp.eq.s32.totalorder %s24, 0
      %p219 = por %p217, %p218
      %s220 = ssub.s32 %s18, %s25
      %p221 = scmp.eq.s32.totalorder %s220, 0
      %s223 = sadd.s32 %s222, 1
      %s224 = scalar_select %p221, %s222, %s223
      %p227 = pneg %p221
      %p228 = scmp.eq.s32.totalorder %s18, 1
      %p229 = por %p227, %p228
      %p230 = scmp.ne.s32.totalorder %s222, %s225
      %p231 = scmp.eq.s32.totalorder %s18, 0
      %p232 = por %p230, %p231
      %p233 = scmp.ne.s32.totalorder %s222, %s225
      %p234 = scmp.eq.s32.totalorder %s23, 1
      %p235 = por %p233, %p234
      %p236 = scmp.ne.s32.totalorder %s225, %s226
      %p237 = scmp.eq.s32.totalorder %s23, 0
      %p238 = por %p236, %p237
      %p239 = scmp.ne.s32.totalorder %s225, %s226
      %p240 = scmp.eq.s32.totalorder %s24, 1
      %p241 = por %p239, %p240
      %p243 = scmp.ne.s32.totalorder %s226, %s242
      %p244 = scmp.eq.s32.totalorder %s24, 0
      %p245 = por %p243, %p244
      %p246 = scmp.le.s32.totalorder 1, %s18
      %p247 = scmp.lt.s32.totalorder %s18, 3
      %p248 = pnand %p246, %p247
      %p249 = pneg %p248
      // Predicated region
      $region9: #{tpu_custom_call.1} parent=5 // pred_check
        _
      $region10: #{tpu_custom_call.1} parent=5 // pred_check_branch
        %251 = sbr.rel (%p248) target = $region12
      $region11: #{tpu_custom_call.1} parent=5 // pred_region
        %s252 = ssub.s32 %s18, 1
        // Predicated region
        $region13: #{tpu_custom_call.1} parent=11 // pred_check
          %p253 = pneg %p65
        $region14: #{tpu_custom_call.1} parent=11 // pred_check_branch
          %255 = sbr.rel (%p253) target = $region16
        $region15: #{tpu_custom_call.1} parent=11 // pred_region
          _
        $region16: #{tpu_custom_call.1} parent=11 // pred_fallthru
          _
        // Predicated region
        $region17: #{tpu_custom_call.1} parent=11 // pred_check
          %p256 = pneg %p86
        $region18: #{tpu_custom_call.1} parent=11 // pred_check_branch
          %258 = sbr.rel (%p256) target = $region20
        $region19: #{tpu_custom_call.1} parent=11 // pred_region
          _
        $region20: #{tpu_custom_call.1} parent=11 // pred_fallthru
          _
        // Predicated region
        $region21: #{tpu_custom_call.1} parent=11 // pred_check
          %p259 = pneg %p107
        $region22: #{tpu_custom_call.1} parent=11 // pred_check_branch
          %261 = sbr.rel (%p259) target = $region24
        $region23: #{tpu_custom_call.1} parent=11 // pred_region
          _
        $region24: #{tpu_custom_call.1} parent=11 // pred_fallthru
          _
        // Predicated region
        $region25: #{tpu_custom_call.1} parent=11 // pred_check
          %p262 = pneg %p128
        $region26: #{tpu_custom_call.1} parent=11 // pred_check_branch
          %264 = sbr.rel (%p262) target = $region28
        $region27: #{tpu_custom_call.1} parent=11 // pred_region
          _
        $region28: #{tpu_custom_call.1} parent=11 // pred_fallthru
          _
        // Predicated region
        $region29: #{tpu_custom_call.1} parent=11 // pred_check
          %p265 = pneg %p149
        $region30: #{tpu_custom_call.1} parent=11 // pred_check_branch
          %267 = sbr.rel (%p265) target = $region32
        $region31: #{tpu_custom_call.1} parent=11 // pred_region
          _
        $region32: #{tpu_custom_call.1} parent=11 // pred_fallthru
          _
        // Predicated region
        $region33: #{tpu_custom_call.1} parent=11 // pred_check
          %p268 = pneg %p170
        $region34: #{tpu_custom_call.1} parent=11 // pred_check_branch
          %270 = sbr.rel (%p268) target = $region36
        $region35: #{tpu_custom_call.1} parent=11 // pred_region
          _
        $region36: #{tpu_custom_call.1} parent=11 // pred_fallthru
          _
        // Predicated region
        $region37: #{tpu_custom_call.1} parent=11 // pred_check
          %p271 = pneg %p191
        $region38: #{tpu_custom_call.1} parent=11 // pred_check_branch
          %273 = sbr.rel (%p271) target = $region40
        $region39: #{tpu_custom_call.1} parent=11 // pred_region
          _
        $region40: #{tpu_custom_call.1} parent=11 // pred_fallthru
          _
        // Predicated region
        $region41: #{tpu_custom_call.1} parent=11 // pred_check
          %p274 = pneg %p212
        $region42: #{tpu_custom_call.1} parent=11 // pred_check_branch
          %276 = sbr.rel (%p274) target = $region44
        $region43: #{tpu_custom_call.1} parent=11 // pred_region
          _
        $region44: #{tpu_custom_call.1} parent=11 // pred_fallthru
          _
      $region12: #{tpu_custom_call.1} parent=5 // pred_fallthru
        _
      %p277 = scmp.lt.s32.totalorder %s18, 2
      // Predicated region
      $region45: #{tpu_custom_call.1} parent=5 // pred_check
        %p278 = pneg %p277
      $region46: #{tpu_custom_call.1} parent=5 // pred_check_branch
        %280 = sbr.rel (%p278) target = $region48
      $region47: #{tpu_custom_call.1} parent=5 // pred_region
        // Predicated region
        $region49: #{tpu_custom_call.1} parent=47 // pred_check
          %p281 = pneg %p38
        $region50: #{tpu_custom_call.1} parent=47 // pred_check_branch
          %283 = sbr.rel (%p281) target = $region52
        $region51: #{tpu_custom_call.1} parent=47 // pred_region
          %p284 = scmp.lt.s32.totalorder %s18, 1
          %s285 = scalar_select %p284, %s18, 1
          %s286 = scalar_lea.vmem %s0, %s285
        $region52: #{tpu_custom_call.1} parent=47 // pred_fallthru
          _
      $region48: #{tpu_custom_call.1} parent=5 // pred_fallthru
        _
      %p287 = scmp.le.s32.totalorder 1, %s18
      %p288 = scmp.lt.s32.totalorder %s18, 3
      %p289 = pnand %p287, %p288
      %p290 = pneg %p289
      // Predicated region
      $region53: #{tpu_custom_call.1} parent=5 // pred_check
        _
      $region54: #{tpu_custom_call.1} parent=5 // pred_check_branch
        %292 = sbr.rel (%p289) target = $region56
      $region55: #{tpu_custom_call.1} parent=5 // pred_region
        %s293 = ssub.s32 %s18, 1
        %p294 = scmp.lt.s32.totalorder %s23, 1
        %s295 = scalar_select %p294, %s23, 1
        %s296 = scalar_lea.vmem %s0, %s295
        %p297 = pneg %p44
        %p298 = pneg %p41
        %p299 = pneg %p65
        %p300 = pneg %p62
        %p301 = pneg %p86
        %p302 = pneg %p83
        %p303 = pneg %p107
        %p304 = pneg %p104
        %p305 = pneg %p128
        %p306 = pneg %p125
        %p307 = pneg %p149
        %p308 = pneg %p146
        %p309 = pneg %p170
        %p310 = pneg %p167
        %p311 = pneg %p191
        %p312 = pneg %p188
        %p313 = pneg %p212
        %p314 = pneg %p209
        %p315 = pneg %p238
        %p316 = pneg %p235
        %s317 = sand.u32 %s225, 1
        %s318 = scalar_lea.sflag [#allocation3], %s317
        %s319 = sand.u32 %s225, 1
        %s320 = smul.addr %s319, 8
        %s321 = scalar_lea.vmem [#allocation2], %s320
        %p322 = scmp.lt.s32.totalorder %s23, 1
        %s323 = scalar_select %p322, %s23, 1
        %s324 = scalar_lea.vmem %s0, %s323
        %v326 = vld [vmem:[%s324] sm:$0x1]
        %v327 = vld [vmem:[%s1] sm:$0xf]
        %v328 = vld [vmem:[%s1 + $0x4] sm:$0xf]
        %v329 = vld [vmem:[%s1 + $0x8] sm:$0xf]
        %v330 = vld [vmem:[%s1 + $0xc] sm:$0xf]
        %v331 = vld [vmem:[%s1 + $0x10] sm:$0xf]
        %v332 = vld [vmem:[%s1 + $0x14] sm:$0xf]
        %v333 = vld [vmem:[%s1 + $0x18] sm:$0xf]
        %v334 = vld [vmem:[%s1 + $0x1c] sm:$0xf]
        %v335 = vld [vmem:[%s1 + $0x20] sm:$0xf]
        %v336 = vld [vmem:[%s1 + $0x24] sm:$0xf]
        %v337 = vld [vmem:[%s1 + $0x28] sm:$0xf]
        %v338 = vld [vmem:[%s1 + $0x2c] sm:$0xf]
        %v339 = vld [vmem:[%s1 + $0x30] sm:$0xf]
        %v340 = vld [vmem:[%s1 + $0x34] sm:$0xf]
        %v341 = vld [vmem:[%s1 + $0x38] sm:$0xf]
        %v342 = vld [vmem:[%s1 + $0x3c] sm:$0xf]
        %v343 = vunpack.c.l.bf16 %v327
        %v344 = vunpack.c.l.bf16 %v328
        %v345 = vunpack.c.l.bf16 %v329
        %v346 = vunpack.c.l.bf16 %v330
        %v347 = vunpack.c.l.bf16 %v331
        %v348 = vunpack.c.l.bf16 %v332
        %v349 = vunpack.c.l.bf16 %v333
        %v350 = vunpack.c.l.bf16 %v334
        %v351 = vunpack.c.l.bf16 %v335
        %v352 = vunpack.c.l.bf16 %v336
        %v353 = vunpack.c.l.bf16 %v337
        %v354 = vunpack.c.l.bf16 %v338
        %v355 = vunpack.c.l.bf16 %v339
        %v356 = vunpack.c.l.bf16 %v340
        %v357 = vunpack.c.l.bf16 %v341
        %v358 = vunpack.c.l.bf16 %v342
        %360 = vset.pattern.permute.xlu0 0
        %361 = vperm.xlu0 %360, %v343
        %v362 = vpop.permute.xlu0 %361
        %365 = vset.pattern.permute.xlu0 0
        %366 = vperm.xlu0 %365, %v344
        %v367 = vpop.permute.xlu0 %366
        %370 = vset.pattern.permute.xlu0 0
        %371 = vperm.xlu0 %370, %v345
        %v372 = vpop.permute.xlu0 %371
        %375 = vset.pattern.permute.xlu0 0
        %376 = vperm.xlu0 %375, %v346
        %v377 = vpop.permute.xlu0 %376
        %380 = vset.pattern.permute.xlu0 0
        %381 = vperm.xlu0 %380, %v347
        %v382 = vpop.permute.xlu0 %381
        %385 = vset.pattern.permute.xlu0 0
        %386 = vperm.xlu0 %385, %v348
        %v387 = vpop.permute.xlu0 %386
        %390 = vset.pattern.permute.xlu0 0
        %391 = vperm.xlu0 %390, %v349
        %v392 = vpop.permute.xlu0 %391
        %395 = vset.pattern.permute.xlu0 0
        %396 = vperm.xlu0 %395, %v350
        %v397 = vpop.permute.xlu0 %396
        %400 = vset.pattern.permute.xlu0 0
        %401 = vperm.xlu0 %400, %v351
        %v402 = vpop.permute.xlu0 %401
        %405 = vset.pattern.permute.xlu0 0
        %406 = vperm.xlu0 %405, %v352
        %v407 = vpop.permute.xlu0 %406
        %410 = vset.pattern.permute.xlu0 0
        %411 = vperm.xlu0 %410, %v353
        %v412 = vpop.permute.xlu0 %411
        %415 = vset.pattern.permute.xlu0 0
        %416 = vperm.xlu0 %415, %v354
        %v417 = vpop.permute.xlu0 %416
        %420 = vset.pattern.permute.xlu0 0
        %421 = vperm.xlu0 %420, %v355
        %v422 = vpop.permute.xlu0 %421
        %425 = vset.pattern.permute.xlu0 0
        %426 = vperm.xlu0 %425, %v356
        %v427 = vpop.permute.xlu0 %426
        %430 = vset.pattern.permute.xlu0 0
        %431 = vperm.xlu0 %430, %v357
        %v432 = vpop.permute.xlu0 %431
        %435 = vset.pattern.permute.xlu0 0
        %436 = vperm.xlu0 %435, %v358
        %v437 = vpop.permute.xlu0 %436
        %v440 = vlaneseq
        %v441 = vshrl.u32 %v440, 7
        %v442 = vsub.s32 0, %v441
        %v443 = vrot.slane %v326, %v442
        %v445 = vmul.f32 %v362, %v443
        %v446 = vmul.f32 %v367, %v443
        %v447 = vmul.f32 %v372, %v443
        %v448 = vmul.f32 %v377, %v443
        %v449 = vmul.f32 %v382, %v443
        %v450 = vmul.f32 %v387, %v443
        %v451 = vmul.f32 %v392, %v443
        %v452 = vmul.f32 %v397, %v443
        %v453 = vmul.f32 %v402, %v443
        %v454 = vmul.f32 %v407, %v443
        %v455 = vmul.f32 %v412, %v443
        %v456 = vmul.f32 %v417, %v443
        %v457 = vmul.f32 %v422, %v443
        %v458 = vmul.f32 %v427, %v443
        %v459 = vmul.f32 %v432, %v443
        %v460 = vmul.f32 %v437, %v443
        %v461 = vld [vmem:[%s2] sm:$0xff]
        %v462 = vld [vmem:[%s2 + $0x8] sm:$0xff]
        %v463 = vld [vmem:[%s2 + $0x10] sm:$0xff]
        %v464 = vld [vmem:[%s2 + $0x18] sm:$0xff]
        %v465 = vld [vmem:[%s2 + $0x20] sm:$0xff]
        %v466 = vld [vmem:[%s2 + $0x28] sm:$0xff]
        %v467 = vld [vmem:[%s2 + $0x30] sm:$0xff]
        %v468 = vld [vmem:[%s2 + $0x38] sm:$0xff]
        %v469 = vld [vmem:[%s2 + $0x40] sm:$0xff]
        %v470 = vld [vmem:[%s2 + $0x48] sm:$0xff]
        %v471 = vld [vmem:[%s2 + $0x50] sm:$0xff]
        %v472 = vld [vmem:[%s2 + $0x58] sm:$0xff]
        %v473 = vld [vmem:[%s2 + $0x60] sm:$0xff]
        %v474 = vld [vmem:[%s2 + $0x68] sm:$0xff]
        %v475 = vld [vmem:[%s2 + $0x70] sm:$0xff]
        %v476 = vld [vmem:[%s2 + $0x78] sm:$0xff]
        %478 = vset.pattern.permute.xlu0 0
        %479 = vperm.xlu0 %478, %v461
        %v480 = vpop.permute.xlu0 %479
        %483 = vset.pattern.permute.xlu0 0
        %484 = vperm.xlu0 %483, %v462
        %v485 = vpop.permute.xlu0 %484
        %488 = vset.pattern.permute.xlu0 0
        %489 = vperm.xlu0 %488, %v463
        %v490 = vpop.permute.xlu0 %489
        %493 = vset.pattern.permute.xlu0 0
        %494 = vperm.xlu0 %493, %v464
        %v495 = vpop.permute.xlu0 %494
        %498 = vset.pattern.permute.xlu0 0
        %499 = vperm.xlu0 %498, %v465
        %v500 = vpop.permute.xlu0 %499
        %503 = vset.pattern.permute.xlu0 0
        %504 = vperm.xlu0 %503, %v466
        %v505 = vpop.permute.xlu0 %504
        %508 = vset.pattern.permute.xlu0 0
        %509 = vperm.xlu0 %508, %v467
        %v510 = vpop.permute.xlu0 %509
        %513 = vset.pattern.permute.xlu0 0
        %514 = vperm.xlu0 %513, %v468
        %v515 = vpop.permute.xlu0 %514
        %518 = vset.pattern.permute.xlu0 0
        %519 = vperm.xlu0 %518, %v469
        %v520 = vpop.permute.xlu0 %519
        %523 = vset.pattern.permute.xlu0 0
        %524 = vperm.xlu0 %523, %v470
        %v525 = vpop.permute.xlu0 %524
        %528 = vset.pattern.permute.xlu0 0
        %529 = vperm.xlu0 %528, %v471
        %v530 = vpop.permute.xlu0 %529
        %533 = vset.pattern.permute.xlu0 0
        %534 = vperm.xlu0 %533, %v472
        %v535 = vpop.permute.xlu0 %534
        %538 = vset.pattern.permute.xlu0 0
        %539 = vperm.xlu0 %538, %v473
        %v540 = vpop.permute.xlu0 %539
        %543 = vset.pattern.permute.xlu0 0
        %544 = vperm.xlu0 %543, %v474
        %v545 = vpop.permute.xlu0 %544
        %548 = vset.pattern.permute.xlu0 0
        %549 = vperm.xlu0 %548, %v475
        %v550 = vpop.permute.xlu0 %549
        %553 = vset.pattern.permute.xlu0 0
        %554 = vperm.xlu0 %553, %v476
        %v555 = vpop.permute.xlu0 %554
        %v557 = vadd.f32 %v445, %v480
        %v558 = vadd.f32 %v446, %v485
        %v559 = vadd.f32 %v447, %v490
        %v560 = vadd.f32 %v448, %v495
        %v561 = vadd.f32 %v449, %v500
        %v562 = vadd.f32 %v450, %v505
        %v563 = vadd.f32 %v451, %v510
        %v564 = vadd.f32 %v452, %v515
        %v565 = vadd.f32 %v453, %v520
        %v566 = vadd.f32 %v454, %v525
        %v567 = vadd.f32 %v455, %v530
        %v568 = vadd.f32 %v456, %v535
        %v569 = vadd.f32 %v457, %v540
        %v570 = vadd.f32 %v458, %v545
        %v571 = vadd.f32 %v459, %v550
        %v572 = vadd.f32 %v460, %v555
        %v573 = vmax.f32 %v557, 0.0
        %v574 = vmax.f32 %v558, 0.0
        %v575 = vmax.f32 %v559, 0.0
        %v576 = vmax.f32 %v560, 0.0
        %v577 = vmax.f32 %v561, 0.0
        %v578 = vmax.f32 %v562, 0.0
        %v579 = vmax.f32 %v563, 0.0
        %v580 = vmax.f32 %v564, 0.0
        %v581 = vmax.f32 %v565, 0.0
        %v582 = vmax.f32 %v566, 0.0
        %v583 = vmax.f32 %v567, 0.0
        %v584 = vmax.f32 %v568, 0.0
        %v585 = vmax.f32 %v569, 0.0
        %v586 = vmax.f32 %v570, 0.0
        %v587 = vmax.f32 %v571, 0.0
        %v588 = vmax.f32 %v572, 0.0
        %v589 = vld [vmem:[%s3] sm:$0xf]
        %v590 = vld [vmem:[%s3 + $0x4] sm:$0xf]
        %v591 = vld [vmem:[%s3 + $0x8] sm:$0xf]
        %v592 = vld [vmem:[%s3 + $0xc] sm:$0xf]
        %v593 = vld [vmem:[%s3 + $0x10] sm:$0xf]
        %v594 = vld [vmem:[%s3 + $0x14] sm:$0xf]
        %v595 = vld [vmem:[%s3 + $0x18] sm:$0xf]
        %v596 = vld [vmem:[%s3 + $0x1c] sm:$0xf]
        %v597 = vld [vmem:[%s3 + $0x20] sm:$0xf]
        %v598 = vld [vmem:[%s3 + $0x24] sm:$0xf]
        %v599 = vld [vmem:[%s3 + $0x28] sm:$0xf]
        %v600 = vld [vmem:[%s3 + $0x2c] sm:$0xf]
        %v601 = vld [vmem:[%s3 + $0x30] sm:$0xf]
        %v602 = vld [vmem:[%s3 + $0x34] sm:$0xf]
        %v603 = vld [vmem:[%s3 + $0x38] sm:$0xf]
        %v604 = vld [vmem:[%s3 + $0x3c] sm:$0xf]
        %v605 = vpack.c.bf16 %v574, %v573
        %v606 = vpack.c.bf16 %v576, %v575
        %v607 = vpack.c.bf16 %v578, %v577
        %v608 = vpack.c.bf16 %v580, %v579
        %v609 = vpack.c.bf16 %v582, %v581
        %v610 = vpack.c.bf16 %v584, %v583
        %v611 = vpack.c.bf16 %v586, %v585
        %v612 = vpack.c.bf16 %v588, %v587
        %v613 = vld [vmem:[%s4] sm:$0xff]
        %v614 = vld [vmem:[%s4 + $0x8] sm:$0xff]
        %v615 = vld [vmem:[%s4 + $0x10] sm:$0xff]
        %v616 = vld [vmem:[%s4 + $0x18] sm:$0xff]
        %v617 = vld [vmem:[%s4 + $0x20] sm:$0xff]
        %v618 = vld [vmem:[%s4 + $0x28] sm:$0xff]
        %v619 = vld [vmem:[%s4 + $0x30] sm:$0xff]
        %v620 = vld [vmem:[%s4 + $0x38] sm:$0xff]
        %v621 = vld [vmem:[%s4 + $0x40] sm:$0xff]
        %v622 = vld [vmem:[%s4 + $0x48] sm:$0xff]
        %v623 = vld [vmem:[%s4 + $0x50] sm:$0xff]
        %v624 = vld [vmem:[%s4 + $0x58] sm:$0xff]
        %v625 = vld [vmem:[%s4 + $0x60] sm:$0xff]
        %v626 = vld [vmem:[%s4 + $0x68] sm:$0xff]
        %v627 = vld [vmem:[%s4 + $0x70] sm:$0xff]
        %v628 = vld [vmem:[%s4 + $0x78] sm:$0xff]
        %630 = vset.pattern.permute.xlu0 0
        %631 = vperm.xlu0 %630, %v613
        %v632 = vpop.permute.xlu0 %631
        %635 = vset.pattern.permute.xlu0 0
        %636 = vperm.xlu0 %635, %v614
        %v637 = vpop.permute.xlu0 %636
        %640 = vset.pattern.permute.xlu0 0
        %641 = vperm.xlu0 %640, %v615
        %v642 = vpop.permute.xlu0 %641
        %645 = vset.pattern.permute.xlu0 0
        %646 = vperm.xlu0 %645, %v616
        %v647 = vpop.permute.xlu0 %646
        %650 = vset.pattern.permute.xlu0 0
        %651 = vperm.xlu0 %650, %v617
        %v652 = vpop.permute.xlu0 %651
        %655 = vset.pattern.permute.xlu0 0
        %656 = vperm.xlu0 %655, %v618
        %v657 = vpop.permute.xlu0 %656
        %660 = vset.pattern.permute.xlu0 0
        %661 = vperm.xlu0 %660, %v619
        %v662 = vpop.permute.xlu0 %661
        %665 = vset.pattern.permute.xlu0 0
        %666 = vperm.xlu0 %665, %v620
        %v667 = vpop.permute.xlu0 %666
        %670 = vset.pattern.permute.xlu0 0
        %671 = vperm.xlu0 %670, %v621
        %v672 = vpop.permute.xlu0 %671
        %675 = vset.pattern.permute.xlu0 0
        %676 = vperm.xlu0 %675, %v622
        %v677 = vpop.permute.xlu0 %676
        %680 = vset.pattern.permute.xlu0 0
        %681 = vperm.xlu0 %680, %v623
        %v682 = vpop.permute.xlu0 %681
        %685 = vset.pattern.permute.xlu0 0
        %686 = vperm.xlu0 %685, %v624
        %v687 = vpop.permute.xlu0 %686
        %690 = vset.pattern.permute.xlu0 0
        %691 = vperm.xlu0 %690, %v625
        %v692 = vpop.permute.xlu0 %691
        %695 = vset.pattern.permute.xlu0 0
        %696 = vperm.xlu0 %695, %v626
        %v697 = vpop.permute.xlu0 %696
        %700 = vset.pattern.permute.xlu0 0
        %701 = vperm.xlu0 %700, %v627
        %v702 = vpop.permute.xlu0 %701
        %705 = vset.pattern.permute.xlu0 0
        %706 = vperm.xlu0 %705, %v628
        %v707 = vpop.permute.xlu0 %706
        %v725 = vunpack.c.l.b16 %v589
        %v726 = vunpack.c.l.b16 %v590
        %v727 = vunpack.c.l.b16 %v591
        %v728 = vunpack.c.l.b16 %v592
        %v729 = vunpack.c.l.b16 %v593
        %v730 = vunpack.c.l.b16 %v594
        %v731 = vunpack.c.l.b16 %v595
        %v732 = vunpack.c.l.b16 %v596
        %v733 = vunpack.c.l.b16 %v597
        %v734 = vunpack.c.l.b16 %v598
        %v735 = vunpack.c.l.b16 %v599
        %v736 = vunpack.c.l.b16 %v600
        %v737 = vunpack.c.l.b16 %v601
        %v738 = vunpack.c.l.b16 %v602
        %v739 = vunpack.c.l.b16 %v603
        %v740 = vunpack.c.l.b16 %v604
        %v741 = vpack.c.b16 %v726, %v725
        %v742 = vpack.c.b16 %v728, %v727
        %v743 = vpack.c.b16 %v730, %v729
        %v744 = vpack.c.b16 %v732, %v731
        %v745 = vpack.c.b16 %v734, %v733
        %v746 = vpack.c.b16 %v736, %v735
        %v747 = vpack.c.b16 %v738, %v737
        %v748 = vpack.c.b16 %v740, %v739
        %757 = vmatprep.subr.bf16.mxu0 0
        %758 = vmatpush1.bf16.msra.mxu0 %v605
        %759 = vmatprep.subr.bf16.mxu0 0
        %760 = vmatpush1.bf16.msra.mxu0 %v606
        %761 = vmatprep.subr.bf16.mxu0 0
        %762 = vmatpush1.bf16.msra.mxu0 %v607
        %763 = vmatprep.subr.bf16.mxu0 0
        %764 = vmatpush1.bf16.msra.mxu0 %v608
        %765 = vmatprep.subr.bf16.mxu0 0
        %766 = vmatpush1.bf16.msra.mxu0 %v609
        %767 = vmatprep.subr.bf16.mxu0 0
        %768 = vmatpush1.bf16.msra.mxu0 %v610
        %769 = vmatprep.subr.bf16.mxu0 0
        %770 = vmatpush1.bf16.msra.mxu0 %v611
        %771 = vmatprep.subr.bf16.mxu0 0
        %772 = vmatpush1.bf16.msra.mxu0 %v612
        %773 = vmatprep.subr.bf16.mxu0 0
        %774 = vmatpush1.bf16.msra.mxu0 0
        %775 = vmatprep.subr.bf16.mxu0 0
        %776 = vmatpush1.bf16.msra.mxu0 0
        %777 = vmatprep.subr.bf16.mxu0 0
        %778 = vmatpush1.bf16.msra.mxu0 0
        %779 = vmatprep.subr.bf16.mxu0 0
        %780 = vmatpush1.bf16.msra.mxu0 0
        %781 = vmatprep.subr.bf16.mxu0 0
        %782 = vmatpush1.bf16.msra.mxu0 0
        %783 = vmatprep.subr.bf16.mxu0 0
        %784 = vmatpush1.bf16.msra.mxu0 0
        %785 = vmatprep.subr.bf16.mxu0 0
        %786 = vmatpush1.bf16.msra.mxu0 0
        %787 = vmatprep.subr.bf16.mxu0 0
        %788 = vmatpush1.bf16.msra.mxu0 0
        %789 = vmatprep.mubr.bf16.mxu0 0
        %790 = vmatmul.mubr.bf16.gmra.mrb[0].mxu0 %v741
        %v791 = vpop.f32.mrb[0].mxu0
        %v792 = vadd.f32 %v632, %v791
        %v793 = vpop.f32.mrb[0].mxu0
        %v794 = vpop.f32.mrb[0].mxu0
        %v795 = vadd.f32 %v637, %v794
        %v796 = vpop.f32.mrb[0].mxu0
        %797 = vmatprep.mubr.bf16.mxu0 0
        %798 = vmatmul.mubr.bf16.gmra.mrb[0].mxu0 %v742
        %v799 = vpop.f32.mrb[0].mxu0
        %v800 = vadd.f32 %v642, %v799
        %v801 = vpop.f32.mrb[0].mxu0
        %v802 = vpop.f32.mrb[0].mxu0
        %v803 = vadd.f32 %v647, %v802
        %v804 = vpop.f32.mrb[0].mxu0
        %805 = vmatprep.mubr.bf16.mxu0 0
        %806 = vmatmul.mubr.bf16.gmra.mrb[0].mxu0 %v743
        %v807 = vpop.f32.mrb[0].mxu0
        %v808 = vadd.f32 %v652, %v807
        %v809 = vpop.f32.mrb[0].mxu0
        %v810 = vpop.f32.mrb[0].mxu0
        %v811 = vadd.f32 %v657, %v810
        %v812 = vpop.f32.mrb[0].mxu0
        %813 = vmatprep.mubr.bf16.mxu0 0
        %814 = vmatmul.mubr.bf16.gmra.mrb[0].mxu0 %v744
        %v815 = vpop.f32.mrb[0].mxu0
        %v816 = vadd.f32 %v662, %v815
        %v817 = vpop.f32.mrb[0].mxu0
        %v818 = vpop.f32.mrb[0].mxu0
        %v819 = vadd.f32 %v667, %v818
        %v820 = vpop.f32.mrb[0].mxu0
        %821 = vmatprep.mubr.bf16.mxu0 0
        %822 = vmatmul.mubr.bf16.gmra.mrb[0].mxu0 %v745
        %v823 = vpop.f32.mrb[0].mxu0
        %v824 = vadd.f32 %v672, %v823
        %v825 = vpop.f32.mrb[0].mxu0
        %v826 = vpop.f32.mrb[0].mxu0
        %v827 = vadd.f32 %v677, %v826
        %v828 = vpop.f32.mrb[0].mxu0
        %829 = vmatprep.mubr.bf16.mxu0 0
        %830 = vmatmul.mubr.bf16.gmra.mrb[0].mxu0 %v746
        %v831 = vpop.f32.mrb[0].mxu0
        %v832 = vadd.f32 %v682, %v831
        %v833 = vpop.f32.mrb[0].mxu0
        %v834 = vpop.f32.mrb[0].mxu0
        %v835 = vadd.f32 %v687, %v834
        %v836 = vpop.f32.mrb[0].mxu0
        %837 = vmatprep.mubr.bf16.mxu0 0
        %838 = vmatmul.mubr.bf16.gmra.mrb[0].mxu0 %v747
        %v839 = vpop.f32.mrb[0].mxu0
        %v840 = vadd.f32 %v692, %v839
        %v841 = vpop.f32.mrb[0].mxu0
        %v842 = vpop.f32.mrb[0].mxu0
        %v843 = vadd.f32 %v697, %v842
        %v844 = vpop.f32.mrb[0].mxu0
        %845 = vmatprep.mubr.bf16.mxu0 0
        %846 = vmatmul.mubr.bf16.gmra.mrb[0].mxu0 %v748
        %v847 = vpop.f32.mrb[0].mxu0
        %v848 = vadd.f32 %v702, %v847
        %v849 = vpop.f32.mrb[0].mxu0
        %v850 = vpop.f32.mrb[0].mxu0
        %v851 = vadd.f32 %v707, %v850
        %v852 = vpop.f32.mrb[0].mxu0
        %853 = vdwg.mxu0
        %v854 = vmax.f32 %v792, 0.0
        %v855 = vmax.f32 %v795, 0.0
        %v856 = vmax.f32 %v800, 0.0
        %v857 = vmax.f32 %v803, 0.0
        %v858 = vmax.f32 %v808, 0.0
        %v859 = vmax.f32 %v811, 0.0
        %v860 = vmax.f32 %v816, 0.0
        %v861 = vmax.f32 %v819, 0.0
        %v862 = vmax.f32 %v824, 0.0
        %v863 = vmax.f32 %v827, 0.0
        %v864 = vmax.f32 %v832, 0.0
        %v865 = vmax.f32 %v835, 0.0
        %v866 = vmax.f32 %v840, 0.0
        %v867 = vmax.f32 %v843, 0.0
        %v868 = vmax.f32 %v848, 0.0
        %v869 = vmax.f32 %v851, 0.0
        %v870 = vld [vmem:[%s5] sm:$0xf]
        %v871 = vld [vmem:[%s5 + $0x4] sm:$0xf]
        %v872 = vld [vmem:[%s5 + $0x8] sm:$0xf]
        %v873 = vld [vmem:[%s5 + $0xc] sm:$0xf]
        %v874 = vld [vmem:[%s5 + $0x10] sm:$0xf]
        %v875 = vld [vmem:[%s5 + $0x14] sm:$0xf]
        %v876 = vld [vmem:[%s5 + $0x18] sm:$0xf]
        %v877 = vld [vmem:[%s5 + $0x1c] sm:$0xf]
        %v878 = vld [vmem:[%s5 + $0x20] sm:$0xf]
        %v879 = vld [vmem:[%s5 + $0x24] sm:$0xf]
        %v880 = vld [vmem:[%s5 + $0x28] sm:$0xf]
        %v881 = vld [vmem:[%s5 + $0x2c] sm:$0xf]
        %v882 = vld [vmem:[%s5 + $0x30] sm:$0xf]
        %v883 = vld [vmem:[%s5 + $0x34] sm:$0xf]
        %v884 = vld [vmem:[%s5 + $0x38] sm:$0xf]
        %v885 = vld [vmem:[%s5 + $0x3c] sm:$0xf]
        %v886 = vpack.c.bf16 %v855, %v854
        %v887 = vpack.c.bf16 %v857, %v856
        %v888 = vpack.c.bf16 %v859, %v858
        %v889 = vpack.c.bf16 %v861, %v860
        %v890 = vpack.c.bf16 %v863, %v862
        %v891 = vpack.c.bf16 %v865, %v864
        %v892 = vpack.c.bf16 %v867, %v866
        %v893 = vpack.c.bf16 %v869, %v868
        %v894 = vld [vmem:[%s6] sm:$0xff]
        %v895 = vld [vmem:[%s6 + $0x8] sm:$0xff]
        %v896 = vld [vmem:[%s6 + $0x10] sm:$0xff]
        %v897 = vld [vmem:[%s6 + $0x18] sm:$0xff]
        %v898 = vld [vmem:[%s6 + $0x20] sm:$0xff]
        %v899 = vld [vmem:[%s6 + $0x28] sm:$0xff]
        %v900 = vld [vmem:[%s6 + $0x30] sm:$0xff]
        %v901 = vld [vmem:[%s6 + $0x38] sm:$0xff]
        %v902 = vld [vmem:[%s6 + $0x40] sm:$0xff]
        %v903 = vld [vmem:[%s6 + $0x48] sm:$0xff]
        %v904 = vld [vmem:[%s6 + $0x50] sm:$0xff]
        %v905 = vld [vmem:[%s6 + $0x58] sm:$0xff]
        %v906 = vld [vmem:[%s6 + $0x60] sm:$0xff]
        %v907 = vld [vmem:[%s6 + $0x68] sm:$0xff]
        %v908 = vld [vmem:[%s6 + $0x70] sm:$0xff]
        %v909 = vld [vmem:[%s6 + $0x78] sm:$0xff]
        %911 = vset.pattern.permute.xlu0 0
        %912 = vperm.xlu0 %911, %v894
        %v913 = vpop.permute.xlu0 %912
        %916 = vset.pattern.permute.xlu0 0
        %917 = vperm.xlu0 %916, %v895
        %v918 = vpop.permute.xlu0 %917
        %921 = vset.pattern.permute.xlu0 0
        %922 = vperm.xlu0 %921, %v896
        %v923 = vpop.permute.xlu0 %922
        %926 = vset.pattern.permute.xlu0 0
        %927 = vperm.xlu0 %926, %v897
        %v928 = vpop.permute.xlu0 %927
        %931 = vset.pattern.permute.xlu0 0
        %932 = vperm.xlu0 %931, %v898
        %v933 = vpop.permute.xlu0 %932
        %936 = vset.pattern.permute.xlu0 0
        %937 = vperm.xlu0 %936, %v899
        %v938 = vpop.permute.xlu0 %937
        %941 = vset.pattern.permute.xlu0 0
        %942 = vperm.xlu0 %941, %v900
        %v943 = vpop.permute.xlu0 %942
        %946 = vset.pattern.permute.xlu0 0
        %947 = vperm.xlu0 %946, %v901
        %v948 = vpop.permute.xlu0 %947
        %951 = vset.pattern.permute.xlu0 0
        %952 = vperm.xlu0 %951, %v902
        %v953 = vpop.permute.xlu0 %952
        %956 = vset.pattern.permute.xlu0 0
        %957 = vperm.xlu0 %956, %v903
        %v958 = vpop.permute.xlu0 %957
        %961 = vset.pattern.permute.xlu0 0
        %962 = vperm.xlu0 %961, %v904
        %v963 = vpop.permute.xlu0 %962
        %966 = vset.pattern.permute.xlu0 0
        %967 = vperm.xlu0 %966, %v905
        %v968 = vpop.permute.xlu0 %967
        %971 = vset.pattern.permute.xlu0 0
        %972 = vperm.xlu0 %971, %v906
        %v973 = vpop.permute.xlu0 %972
        %976 = vset.pattern.permute.xlu0 0
        %977 = vperm.xlu0 %976, %v907
        %v978 = vpop.permute.xlu0 %977
        %981 = vset.pattern.permute.xlu0 0
        %982 = vperm.xlu0 %981, %v908
        %v983 = vpop.permute.xlu0 %982
        %986 = vset.pattern.permute.xlu0 0
        %987 = vperm.xlu0 %986, %v909
        %v988 = vpop.permute.xlu0 %987
        %v1006 = vunpack.c.l.b16 %v870
        %v1007 = vunpack.c.l.b16 %v871
        %v1008 = vunpack.c.l.b16 %v872
        %v1009 = vunpack.c.l.b16 %v873
        %v1010 = vunpack.c.l.b16 %v874
        %v1011 = vunpack.c.l.b16 %v875
        %v1012 = vunpack.c.l.b16 %v876
        %v1013 = vunpack.c.l.b16 %v877
        %v1014 = vunpack.c.l.b16 %v878
        %v1015 = vunpack.c.l.b16 %v879
        %v1016 = vunpack.c.l.b16 %v880
        %v1017 = vunpack.c.l.b16 %v881
        %v1018 = vunpack.c.l.b16 %v882
        %v1019 = vunpack.c.l.b16 %v883
        %v1020 = vunpack.c.l.b16 %v884
        %v1021 = vunpack.c.l.b16 %v885
        %v1022 = vpack.c.b16 %v1007, %v1006
        %v1023 = vpack.c.b16 %v1009, %v1008
        %v1024 = vpack.c.b16 %v1011, %v1010
        %v1025 = vpack.c.b16 %v1013, %v1012
        %v1026 = vpack.c.b16 %v1015, %v1014
        %v1027 = vpack.c.b16 %v1017, %v1016
        %v1028 = vpack.c.b16 %v1019, %v1018
        %v1029 = vpack.c.b16 %v1021, %v1020
        %1038 = vmatprep.subr.bf16.mxu0 0
        %1039 = vmatpush1.bf16.msra.mxu0 %v886
        %1040 = vmatprep.subr.bf16.mxu0 0
        %1041 = vmatpush1.bf16.msra.mxu0 %v887
        %1042 = vmatprep.subr.bf16.mxu0 0
        %1043 = vmatpush1.bf16.msra.mxu0 %v888
        %1044 = vmatprep.subr.bf16.mxu0 0
        %1045 = vmatpush1.bf16.msra.mxu0 %v889
        %1046 = vmatprep.subr.bf16.mxu0 0
        %1047 = vmatpush1.bf16.msra.mxu0 %v890
        %1048 = vmatprep.subr.bf16.mxu0 0
        %1049 = vmatpush1.bf16.msra.mxu0 %v891
        %1050 = vmatprep.subr.bf16.mxu0 0
        %1051 = vmatpush1.bf16.msra.mxu0 %v892
        %1052 = vmatprep.subr.bf16.mxu0 0
        %1053 = vmatpush1.bf16.msra.mxu0 %v893
        %1054 = vmatprep.subr.bf16.mxu0 0
        %1055 = vmatpush1.bf16.msra.mxu0 0
        %1056 = vmatprep.subr.bf16.mxu0 0
        %1057 = vmatpush1.bf16.msra.mxu0 0
        %1058 = vmatprep.subr.bf16.mxu0 0
        %1059 = vmatpush1.bf16.msra.mxu0 0
        %1060 = vmatprep.subr.bf16.mxu0 0
        %1061 = vmatpush1.bf16.msra.mxu0 0
        %1062 = vmatprep.subr.bf16.mxu0 0
        %1063 = vmatpush1.bf16.msra.mxu0 0
        %1064 = vmatprep.subr.bf16.mxu0 0
        %1065 = vmatpush1.bf16.msra.mxu0 0
        %1066 = vmatprep.subr.bf16.mxu0 0
        %1067 = vmatpush1.bf16.msra.mxu0 0
        %1068 = vmatprep.subr.bf16.mxu0 0
        %1069 = vmatpush1.bf16.msra.mxu0 0
        %1070 = vmatprep.mubr.bf16.mxu0 0
        %1071 = vmatmul.mubr.bf16.gmra.mrb[0].mxu0 %v1022
        %v1072 = vpop.f32.mrb[0].mxu0
        %v1073 = vadd.f32 %v913, %v1072
        %v1074 = vpop.f32.mrb[0].mxu0
        %v1075 = vpop.f32.mrb[0].mxu0
        %v1076 = vadd.f32 %v918, %v1075
        %v1077 = vpop.f32.mrb[0].mxu0
        %1078 = vmatprep.mubr.bf16.mxu0 0
        %1079 = vmatmul.mubr.bf16.gmra.mrb[0].mxu0 %v1023
        %v1080 = vpop.f32.mrb[0].mxu0
        %v1081 = vadd.f32 %v923, %v1080
        %v1082 = vpop.f32.mrb[0].mxu0
        %v1083 = vpop.f32.mrb[0].mxu0
        %v1084 = vadd.f32 %v928, %v1083
        %v1085 = vpop.f32.mrb[0].mxu0
        %1086 = vmatprep.mubr.bf16.mxu0 0
        %1087 = vmatmul.mubr.bf16.gmra.mrb[0].mxu0 %v1024
        %v1088 = vpop.f32.mrb[0].mxu0
        %v1089 = vadd.f32 %v933, %v1088
        %v1090 = vpop.f32.mrb[0].mxu0
        %v1091 = vpop.f32.mrb[0].mxu0
        %v1092 = vadd.f32 %v938, %v1091
        %v1093 = vpop.f32.mrb[0].mxu0
        %1094 = vmatprep.mubr.bf16.mxu0 0
        %1095 = vmatmul.mubr.bf16.gmra.mrb[0].mxu0 %v1025
        %v1096 = vpop.f32.mrb[0].mxu0
        %v1097 = vadd.f32 %v943, %v1096
        %v1098 = vpop.f32.mrb[0].mxu0
        %v1099 = vpop.f32.mrb[0].mxu0
        %v1100 = vadd.f32 %v948, %v1099
        %v1101 = vpop.f32.mrb[0].mxu0
        %1102 = vmatprep.mubr.bf16.mxu0 0
        %1103 = vmatmul.mubr.bf16.gmra.mrb[0].mxu0 %v1026
        %v1104 = vpop.f32.mrb[0].mxu0
        %v1105 = vadd.f32 %v953, %v1104
        %v1106 = vpop.f32.mrb[0].mxu0
        %v1107 = vpop.f32.mrb[0].mxu0
        %v1108 = vadd.f32 %v958, %v1107
        %v1109 = vpop.f32.mrb[0].mxu0
        %1110 = vmatprep.mubr.bf16.mxu0 0
        %1111 = vmatmul.mubr.bf16.gmra.mrb[0].mxu0 %v1027
        %v1112 = vpop.f32.mrb[0].mxu0
        %v1113 = vadd.f32 %v963, %v1112
        %v1114 = vpop.f32.mrb[0].mxu0
        %v1115 = vpop.f32.mrb[0].mxu0
        %v1116 = vadd.f32 %v968, %v1115
        %v1117 = vpop.f32.mrb[0].mxu0
        %1118 = vmatprep.mubr.bf16.mxu0 0
        %1119 = vmatmul.mubr.bf16.gmra.mrb[0].mxu0 %v1028
        %v1120 = vpop.f32.mrb[0].mxu0
        %v1121 = vadd.f32 %v973, %v1120
        %v1122 = vpop.f32.mrb[0].mxu0
        %v1123 = vpop.f32.mrb[0].mxu0
        %v1124 = vadd.f32 %v978, %v1123
        %v1125 = vpop.f32.mrb[0].mxu0
        %1126 = vmatprep.mubr.bf16.mxu0 0
        %1127 = vmatmul.mubr.bf16.gmra.mrb[0].mxu0 %v1029
        %v1128 = vpop.f32.mrb[0].mxu0
        %v1129 = vadd.f32 %v983, %v1128
        %v1130 = vpop.f32.mrb[0].mxu0
        %v1131 = vpop.f32.mrb[0].mxu0
        %v1132 = vadd.f32 %v988, %v1131
        %v1133 = vpop.f32.mrb[0].mxu0
        %1134 = vdwg.mxu0
        %v1135 = vmax.f32 %v1073, 0.0
        %v1136 = vmax.f32 %v1076, 0.0
        %v1137 = vmax.f32 %v1081, 0.0
        %v1138 = vmax.f32 %v1084, 0.0
        %v1139 = vmax.f32 %v1089, 0.0
        %v1140 = vmax.f32 %v1092, 0.0
        %v1141 = vmax.f32 %v1097, 0.0
        %v1142 = vmax.f32 %v1100, 0.0
        %v1143 = vmax.f32 %v1105, 0.0
        %v1144 = vmax.f32 %v1108, 0.0
        %v1145 = vmax.f32 %v1113, 0.0
        %v1146 = vmax.f32 %v1116, 0.0
        %v1147 = vmax.f32 %v1121, 0.0
        %v1148 = vmax.f32 %v1124, 0.0
        %v1149 = vmax.f32 %v1129, 0.0
        %v1150 = vmax.f32 %v1132, 0.0
        %v1151 = vld [vmem:[%s7] sm:$0xf]
        %v1152 = vpack.c.bf16 %v1136, %v1135
        %v1153 = vpack.c.bf16 %v1138, %v1137
        %v1154 = vpack.c.bf16 %v1140, %v1139
        %v1155 = vpack.c.bf16 %v1142, %v1141
        %v1156 = vpack.c.bf16 %v1144, %v1143
        %v1157 = vpack.c.bf16 %v1146, %v1145
        %v1158 = vpack.c.bf16 %v1148, %v1147
        %v1159 = vpack.c.bf16 %v1150, %v1149
        %v1160 = vld [vmem:[%s8] sm:$0xff]
        %1162 = vset.pattern.permute.xlu0 0
        %1163 = vperm.xlu0 %1162, %v1160
        %v1164 = vpop.permute.xlu0 %1163
        %1166 = vmatprep.subr.bf16.mxu0 0
        %1167 = vmatpush1.bf16.msra.mxu0 %v1152
        %1168 = vmatprep.subr.bf16.mxu0 0
        %1169 = vmatpush1.bf16.msra.mxu0 %v1153
        %1170 = vmatprep.subr.bf16.mxu0 0
        %1171 = vmatpush1.bf16.msra.mxu0 %v1154
        %1172 = vmatprep.subr.bf16.mxu0 0
        %1173 = vmatpush1.bf16.msra.mxu0 %v1155
        %1174 = vmatprep.subr.bf16.mxu0 0
        %1175 = vmatpush1.bf16.msra.mxu0 %v1156
        %1176 = vmatprep.subr.bf16.mxu0 0
        %1177 = vmatpush1.bf16.msra.mxu0 %v1157
        %1178 = vmatprep.subr.bf16.mxu0 0
        %1179 = vmatpush1.bf16.msra.mxu0 %v1158
        %1180 = vmatprep.subr.bf16.mxu0 0
        %1181 = vmatpush1.bf16.msra.mxu0 %v1159
        %1182 = vmatprep.subr.bf16.mxu0 0
        %1183 = vmatpush1.bf16.msra.mxu0 0
        %1184 = vmatprep.subr.bf16.mxu0 0
        %1185 = vmatpush1.bf16.msra.mxu0 0
        %1186 = vmatprep.subr.bf16.mxu0 0
        %1187 = vmatpush1.bf16.msra.mxu0 0
        %1188 = vmatprep.subr.bf16.mxu0 0
        %1189 = vmatpush1.bf16.msra.mxu0 0
        %1190 = vmatprep.subr.bf16.mxu0 0
        %1191 = vmatpush1.bf16.msra.mxu0 0
        %1192 = vmatprep.subr.bf16.mxu0 0
        %1193 = vmatpush1.bf16.msra.mxu0 0
        %1194 = vmatprep.subr.bf16.mxu0 0
        %1195 = vmatpush1.bf16.msra.mxu0 0
        %1196 = vmatprep.subr.bf16.mxu0 0
        %1197 = vmatpush1.bf16.msra.mxu0 0
        %1198 = vmatprep.mubr.bf16.mxu0 0
        %1199 = vmatmul.mubr.bf16.gmra.mrb[0].mxu0 %v1151
        %v1200 = vpop.f32.mrb[0].mxu0
        %v1201 = vadd.f32 %v1164, %v1200
        %v1202 = vpop.f32.mrb[0].mxu0
        %v1203 = vpop.f32.mrb[0].mxu0
        %v1204 = vpop.f32.mrb[0].mxu0
        %1205 = vdwg.mxu0
        %1206 = vst [vmem:[%s321] sm:$0xff] %v1201
        %s1207 = sand.u32 %s225, 1
        %s1208 = scalar_lea.sflag [#allocation3], %s1207
        %s1209 = sand.u32 %s225, 1
        %s1210 = smul.addr %s1209, 8
        %s1211 = scalar_lea.vmem [#allocation2], %s1210
        // Predicated region
        $region57: #{tpu_custom_call.1} parent=55 // pred_check
          %p1212 = pneg %p235
        $region58: #{tpu_custom_call.1} parent=55 // pred_check_branch
          %1214 = sbr.rel (%p1212) target = $region60
        $region59: #{tpu_custom_call.1} parent=55 // pred_region
          %s1216 = ssub.s32 128, 128
          %1217 = vsyncadd %s1208, %s1216
          %s1218 = smul.addr %s23, 128
          %s1219 = scalar_lea.hbm %s9, %s1218
          %s1221 = sshll.u32 %s1211, 4
          %s1222 = int_to_ptr.vmem [resolvable:$true] %s1221
          %1224 = dma.vmem_to_hbm [thread:$0]  %s1222, 128, %s1219, %s1208
        $region60: #{tpu_custom_call.1} parent=55 // pred_fallthru
          _
      $region56: #{tpu_custom_call.1} parent=5 // pred_fallthru
        _
      %p1225 = scmp.le.s32.totalorder 2, %s18
      // Predicated region
      $region61: #{tpu_custom_call.1} parent=5 // pred_check
        %p1226 = pneg %p1225
      $region62: #{tpu_custom_call.1} parent=5 // pred_check_branch
        %1228 = sbr.rel (%p1226) target = $region64
      $region63: #{tpu_custom_call.1} parent=5 // pred_region
        %s1229 = ssub.s32 %s18, 2
        // Predicated region
        $region65: #{tpu_custom_call.1} parent=63 // pred_check
          %p1230 = pneg %p241
        $region66: #{tpu_custom_call.1} parent=63 // pred_check_branch
          %1232 = sbr.rel (%p1230) target = $region68
        $region67: #{tpu_custom_call.1} parent=63 // pred_region
          %s1233 = sand.u32 %s226, 1
          %s1234 = scalar_lea.sflag [#allocation3], %s1233
          %s1235 = sand.u32 %s226, 1
          %s1236 = smul.addr %s1235, 8
          %s1237 = scalar_lea.vmem [#allocation2], %s1236
          %1238 = dma.done %s1234, 128
        $region68: #{tpu_custom_call.1} parent=63 // pred_fallthru
          _
      $region64: #{tpu_custom_call.1} parent=5 // pred_fallthru
        _
    $region6: #{tpu_custom_call.1} parent=1 // loop_footer
      %s22 = sadd.s32 1, %s18
    $region7: #{tpu_custom_call.1} parent=1 // loop_footer_branch
      %17 = sbr.rel target = $region3
    $region8: #{tpu_custom_call.1} parent=1 // loop_exit
      _
    %1239 = vsyncpa [#allocation3], 1
    %s1240 = scalar_lea.sflag [#allocation3], 1
    %1241 = vsyncpa %s1240, 1

</llo_original>
